<compile_context>
chip_gen: v7x
topology: tpu7x:2x2x1
jax: 0.10.0
libtpu: 0.0.40
codegen_flags: <defaults>
</compile_context>

<pallas_src>
import functools

import jax
import jax.numpy as jnp
from jax.experimental import pallas as pl
from jax.experimental.pallas import tpu as pltpu


def _round_up(n: int, m: int) -> int:
    return ((n + m - 1) // m) * m


def classifier_kernel(x_ref, w2_ref, b2_ref, w3_ref, b3_ref, fc2_ref, fc3_ref):
    # One batch tile per grid step; both linear layers fused, f32 MXU accumulate.
    x = x_ref[...]
    h = jnp.dot(x, w2_ref[...], preferred_element_type=jnp.float32) + b2_ref[...]
    fc2_ref[...] = h.astype(fc2_ref.dtype)
    y = jnp.dot(h.astype(w3_ref.dtype), w3_ref[...],
                preferred_element_type=jnp.float32) + b3_ref[...]
    fc3_ref[...] = y.astype(fc3_ref.dtype)


def prepare_classifier_params(w2, b2, w3, b3):
    """One-time parameter prep.

    Inputs use (in, out) layout: w2 (H1, H2), w3 (H2, O).  (If converting from
    PyTorch's (out, in) layout, transpose ONCE here — never per forward call.)
    Pads feature dims up to multiples of 128 so the kernel's lane/N axes are
    dense and MXU-aligned.  Padding is with zeros, so the math is unchanged.
    """
    H1, H2 = w2.shape
    O = w3.shape[1]
    H1p, H2p, Op = _round_up(H1, 128), _round_up(H2, 128), _round_up(O, 128)

    w2p = jnp.pad(w2, ((0, H1p - H1), (0, H2p - H2)))
    w3p = jnp.pad(w3, ((0, H2p - H2), (0, Op - O)))
    b2p = jnp.pad(b2, (0, H2p - H2)).reshape(1, H2p)
    b3p = jnp.pad(b3, (0, Op - O)).reshape(1, Op)
    return (w2p, b2p, w3p, b3p), (H1, H2, O)


def classifier_forward(x, padded_params, dims, *, batch_tile=512):
    """x: (B, H1).  padded_params/dims from `prepare_classifier_params`."""
    w2p, b2p, w3p, b3p = padded_params
    H1, H2, O = dims
    B = x.shape[0]
    H1p, H2p = w2p.shape
    Op = w3p.shape[1]

    # Batch tile: large enough to pipeline / feed the MXU M axis, but never
    # bigger than (padded) B.  Pad B up to a whole number of tiles.
    TB = min(batch_tile, _round_up(B, 8))
    Bp = _round_up(B, TB)

    xp = jnp.pad(x, ((0, Bp - B), (0, H1p - H1)))
    dtype = x.dtype
    itemsize = jnp.dtype(dtype).itemsize

    # VMEM budget: resident weights/biases + double-buffered x/fc2/fc3 tiles,
    # with headroom; clamp to stay under v7x's 64 MiB physical VMEM.
    resident_bytes = (H1p * H2p + H2p * Op + H2p + Op) * itemsize
    tile_bytes = 2 * TB * (H1p + H2p + Op) * itemsize
    vmem_limit = min(max(32 << 20, int(1.5 * (resident_bytes + tile_bytes))),
                     64 << 20)

    cost = pl.CostEstimate(
        flops=2 * Bp * (H1p * H2p + H2p * Op),
        bytes_accessed=(xp.size + w2p.size + w3p.size + b2p.size + b3p.size
                        + Bp * H2p + Bp * Op) * itemsize,
        transcendentals=0,
    )

    fc2_p, fc3_p = pl.pallas_call(
        classifier_kernel,
        out_shape=(
            jax.ShapeDtypeStruct((Bp, H2p), dtype),
            jax.ShapeDtypeStruct((Bp, Op), dtype),
        ),
        grid=(Bp // TB,),
        in_specs=[
            pl.BlockSpec((TB, H1p), lambda i: (i, 0)),     # x: tiled over batch
            pl.BlockSpec((H1p, H2p), lambda i: (0, 0)),    # w2: VMEM-resident
            pl.BlockSpec((1, H2p), lambda i: (0, 0)),      # b2: VMEM-resident
            pl.BlockSpec((H2p, Op), lambda i: (0, 0)),     # w3: VMEM-resident
            pl.BlockSpec((1, Op), lambda i: (0, 0)),       # b3: VMEM-resident
        ],
        out_specs=(
            pl.BlockSpec((TB, H2p), lambda i: (i, 0)),
            pl.BlockSpec((TB, Op), lambda i: (i, 0)),
        ),
        compiler_params=pltpu.CompilerParams(
            dimension_semantics=("parallel",),             # shards batch across TCs on v7x
            vmem_limit_bytes=vmem_limit,
        ),
        cost_estimate=cost,
    )(xp, w2p, b2p, w3p, b3p)

    # Slice back to the true (unpadded) shapes.
    return fc2_p[:B, :H2], fc3_p[:B, :O]


def init_linear_params(key, in_features, out_features, dtype=jnp.float32):
    # PyTorch nn.Linear default init: U(-1/sqrt(fan_in), 1/sqrt(fan_in)).
    # Weight is generated directly in (in, out) layout (same distribution).
    kw, kb = jax.random.split(key)
    bound = 1.0 / jnp.sqrt(jnp.asarray(in_features, dtype))
    w = jax.random.uniform(kw, (in_features, out_features), dtype, -bound, bound)
    b = jax.random.uniform(kb, (out_features,), dtype, -bound, bound)
    return w, b


if __name__ == "__main__":
    # Small shapes consistent with the module.
    batch = 2
    hidden_fc_size_1 = 32
    hidden_fc_size_2 = 16
    output_size = 4

    key = jax.random.PRNGKey(0)
    kx, k2, k3 = jax.random.split(key, 3)

    x = jax.random.normal(kx, (batch, hidden_fc_size_1), jnp.float32)
    w2, b2 = init_linear_params(k2, hidden_fc_size_1, hidden_fc_size_2)
    w3, b3 = init_linear_params(k3, hidden_fc_size_2, output_size)

    # One-time parameter prep (padding / layout), outside the per-call path.
    padded_params, dims = prepare_classifier_params(w2, b2, w3, b3)

    fwd = functools.partial(classifier_forward, padded_params=padded_params,
                            dims=dims)
    x_fc2, x_fc3 = fwd(x)
    jax.block_until_ready((x_fc2, x_fc3))

    # Reference check against plain JAX (same math as the PyTorch forward).
    ref_fc2 = x @ w2 + b2
    ref_fc3 = ref_fc2 @ w3 + b3
    assert x_fc2.shape == (batch, hidden_fc_size_2)
    assert x_fc3.shape == (batch, output_size)
    assert jnp.allclose(x_fc2, ref_fc2, atol=1e-5, rtol=1e-5)
    assert jnp.allclose(x_fc3, ref_fc3, atol=1e-5, rtol=1e-5)

    print("KERNEL_OK")
</pallas_src>

<mosaic_0001>
module attributes {stable_mosaic.version = 11 : i64} {
  func.func @classifier_kernel(%arg0: i32, %arg1: memref<8x128xf32, #tpu.memory_space<vmem>>, %arg2: memref<128x128xf32, #tpu.memory_space<vmem>>, %arg3: memref<1x128xf32, #tpu.memory_space<vmem>>, %arg4: memref<128x128xf32, #tpu.memory_space<vmem>>, %arg5: memref<1x128xf32, #tpu.memory_space<vmem>>, %arg6: memref<8x128xf32, #tpu.memory_space<vmem>>, %arg7: memref<8x128xf32, #tpu.memory_space<vmem>>) attributes {dimension_semantics = [#tpu.dimension_semantics<parallel>], iteration_bounds = array<i64: 1>, scalar_prefetch = 0 : i64, scratch_operands = 0 : i64, tpu.core_type = #tpu.core_type<tc>, window_params = [{transform_indices = @transform_0, window_bounds = array<i64: 8, 128>}, {pipeline_mode = #tpu.pipeline_mode<synchronous>, transform_indices = @transform_1, window_bounds = array<i64: 128, 128>}, {pipeline_mode = #tpu.pipeline_mode<synchronous>, transform_indices = @transform_2, window_bounds = array<i64: 1, 128>}, {pipeline_mode = #tpu.pipeline_mode<synchronous>, transform_indices = @transform_3, window_bounds = array<i64: 128, 128>}, {pipeline_mode = #tpu.pipeline_mode<synchronous>, transform_indices = @transform_4, window_bounds = array<i64: 1, 128>}, {transform_indices = @transform_5, window_bounds = array<i64: 8, 128>}, {transform_indices = @transform_6, window_bounds = array<i64: 8, 128>}]} {
    %c0 = arith.constant 0 : index
    %c0_0 = arith.constant 0 : index
    %0 = vector.load %arg1[%c0, %c0_0] : memref<8x128xf32, #tpu.memory_space<vmem>>, vector<8x128xf32>
    %c0_1 = arith.constant 0 : index
    %c0_2 = arith.constant 0 : index
    %1 = vector.load %arg2[%c0_1, %c0_2] : memref<128x128xf32, #tpu.memory_space<vmem>>, vector<128x128xf32>
    %cst = arith.constant dense<0.000000e+00> : vector<8x128xf32>
    %2 = tpu.matmul %0, %1, %cst {dimension_numbers = #tpu.dot_dimension_numbers<[1], [0], [0], [1], [0, 0, 1, 1], [], []>} : vector<8x128xf32>, vector<128x128xf32>, vector<8x128xf32> -> vector<8x128xf32>
    %c0_3 = arith.constant 0 : index
    %c0_4 = arith.constant 0 : index
    %3 = vector.load %arg3[%c0_3, %c0_4] : memref<1x128xf32, #tpu.memory_space<vmem>>, vector<1x128xf32>
    %4 = vector.broadcast %3 : vector<1x128xf32> to vector<8x128xf32>
    %5 = arith.addf %2, %4 : vector<8x128xf32>
    %c0_5 = arith.constant 0 : index
    %c0_6 = arith.constant 0 : index
    %6 = vector.load %arg6[%c0_5, %c0_6] : memref<8x128xf32, #tpu.memory_space<vmem>>, vector<8x128xf32>
    tpu.vector_store %arg6[%c0_5, %c0_6], %5 {strides = array<i32>} : memref<8x128xf32, #tpu.memory_space<vmem>>, vector<8x128xf32>,
    %c0_7 = arith.constant 0 : index
    %c0_8 = arith.constant 0 : index
    %7 = vector.load %arg4[%c0_7, %c0_8] : memref<128x128xf32, #tpu.memory_space<vmem>>, vector<128x128xf32>
    %cst_9 = arith.constant dense<0.000000e+00> : vector<8x128xf32>
    %8 = tpu.matmul %5, %7, %cst_9 {dimension_numbers = #tpu.dot_dimension_numbers<[1], [0], [0], [1], [0, 0, 1, 1], [], []>} : vector<8x128xf32>, vector<128x128xf32>, vector<8x128xf32> -> vector<8x128xf32>
    %c0_10 = arith.constant 0 : index
    %c0_11 = arith.constant 0 : index
    %9 = vector.load %arg5[%c0_10, %c0_11] : memref<1x128xf32, #tpu.memory_space<vmem>>, vector<1x128xf32>
    %10 = vector.broadcast %9 : vector<1x128xf32> to vector<8x128xf32>
    %11 = arith.addf %8, %10 : vector<8x128xf32>
    %c0_12 = arith.constant 0 : index
    %c0_13 = arith.constant 0 : index
    %12 = vector.load %arg7[%c0_12, %c0_13] : memref<8x128xf32, #tpu.memory_space<vmem>>, vector<8x128xf32>
    tpu.vector_store %arg7[%c0_12, %c0_13], %11 {strides = array<i32>} : memref<8x128xf32, #tpu.memory_space<vmem>>, vector<8x128xf32>,
    return
  }
  func.func @transform_0(%arg0: i32) -> (i32, i32) {
    %c0_i32 = arith.constant 0 : i32
    %c0_i32_0 = arith.constant 0 : i32
    return %arg0, %c0_i32 : i32, i32
  }
  func.func @transform_1(%arg0: i32) -> (i32, i32) {
    %c0_i32 = arith.constant 0 : i32
    %c0_i32_0 = arith.constant 0 : i32
    %c0_i32_1 = arith.constant 0 : i32
    return %c0_i32, %c0_i32_0 : i32, i32
  }
  func.func @transform_2(%arg0: i32) -> (i32, i32) {
    %c0_i32 = arith.constant 0 : i32
    %c0_i32_0 = arith.constant 0 : i32
    %c0_i32_1 = arith.constant 0 : i32
    return %c0_i32, %c0_i32_0 : i32, i32
  }
  func.func @transform_3(%arg0: i32) -> (i32, i32) {
    %c0_i32 = arith.constant 0 : i32
    %c0_i32_0 = arith.constant 0 : i32
    %c0_i32_1 = arith.constant 0 : i32
    return %c0_i32, %c0_i32_0 : i32, i32
  }
  func.func @transform_4(%arg0: i32) -> (i32, i32) {
    %c0_i32 = arith.constant 0 : i32
    %c0_i32_0 = arith.constant 0 : i32
    %c0_i32_1 = arith.constant 0 : i32
    return %c0_i32, %c0_i32_0 : i32, i32
  }
  func.func @transform_5(%arg0: i32) -> (i32, i32) {
    %c0_i32 = arith.constant 0 : i32
    %c0_i32_0 = arith.constant 0 : i32
    return %arg0, %c0_i32 : i32, i32
  }
  func.func @transform_6(%arg0: i32) -> (i32, i32) {
    %c0_i32 = arith.constant 0 : i32
    %c0_i32_0 = arith.constant 0 : i32
    return %arg0, %c0_i32 : i32, i32
  }
}

</mosaic_0001>

<llo_original>
// kernel: tpu_custom_call.1
$region0: #{tpu_custom_call.1}
  #allocation0 [shape = 'u32[]', space=smem, size = 0x4, offset = 0x4, fixed_abs, tag = 'smem constant byte address 0x4 - core index']
  #allocation1 [shape = 'u32[144,128]{1,0:T(1,128)}', space=vmem, size = 0x12000, scoped, tag = 'internal scratch']
  %s0 = inlined_call_operand.hbm [shape: f32[8,128], index: 0, kind: input, shape index: {}]
  %s1 = inlined_call_operand.hbm [shape: f32[128,128], index: 1, kind: input, shape index: {}]
  %s2 = inlined_call_operand.vmem [shape: f32[1,128], index: 2, kind: input, shape index: {}]
  %s3 = inlined_call_operand.hbm [shape: f32[128,128], index: 3, kind: input, shape index: {}]
  %s4 = inlined_call_operand.vmem [shape: f32[1,128], index: 4, kind: input, shape index: {}]
  %s5 = inlined_call_operand.hbm [shape: f32[8,128], index: 5, kind: output, shape index: {0}]
  %s6 = inlined_call_operand.hbm [shape: f32[8,128], index: 6, kind: output, shape index: {1}]
  %7 = xla_tuple %s5, %s6
  %s8 = sld [smem:[#allocation0]]
  $region50: #{tpu_custom_call.1} parent=0
    _
  %s10 = ssub.s32 1, %s8
  %s11 = scalar_select 0, %s10, %s8
  $region1: #{tpu_custom_call.1} parent=0
    #allocation2 [shape = 'u8[4096]{0}', space=vmem, size = 0x1000, scoped, tag = 'input window, operand 0, single buffered']
    #allocation3 [shape = 's32[1]{0}', space=sflag, size = 0x4, scoped, tag = 'scoped memory for tpu_custom_call.1']
    #allocation4 [shape = 's32[1]{0}', space=sflag, size = 0x4, scoped, tag = 'scoped memory for tpu_custom_call.1']
    #allocation5 [shape = 'u8[65536]{0}', space=vmem, size = 0x10000, scoped, tag = 'input window, operand 1, single buffered']
    #allocation6 [shape = 's32[1]{0}', space=sflag, size = 0x4, scoped, tag = 'scoped memory for tpu_custom_call.1']
    #allocation7 [shape = 'u8[65536]{0}', space=vmem, size = 0x10000, scoped, tag = 'input window, operand 3, single buffered']
    #allocation8 [shape = 'u8[4096]{0}', space=vmem, size = 0x1000, scoped, tag = 'output window, operand 0, single buffered']
    #allocation9 [shape = 'u8[4096]{0}', space=vmem, size = 0x1000, scoped, tag = 'output window, operand 1, single buffered']
    #allocation10 [shape = 's32[1]{0}', space=sflag, size = 0x4, scoped, tag = 'scoped memory for tpu_custom_call.1']
    %12 = vsyncpa [#allocation3], 0
    %13 = vsyncpa [#allocation6], 0
    %14 = vsyncpa [#allocation4], 0
    %15 = vsyncpa [#allocation10], 0
    // Predicated region
    $region2: #{tpu_custom_call.1} parent=1 // pred_check
      _
    $region3: #{tpu_custom_call.1} parent=1 // pred_check_branch
      %17 = sbr.rel (0) target = $region5
    $region4: #{tpu_custom_call.1} parent=1 // pred_region
      %s19 = ssub.s32 128, 128
      %20 = vsyncadd [#allocation3], %s19
      %s22 = sshll.u32 [#allocation2], 4
      %s23 = int_to_ptr.vmem [resolvable:$true] %s22
      %25 = dma.hbm_to_vmem [thread:$0]  %s0, 128, %s23, [#allocation3]
    $region5: #{tpu_custom_call.1} parent=1 // pred_fallthru
      _
    // Predicated region
    $region6: #{tpu_custom_call.1} parent=1 // pred_check
      _
    $region7: #{tpu_custom_call.1} parent=1 // pred_check_branch
      %27 = sbr.rel (0) target = $region9
    $region8: #{tpu_custom_call.1} parent=1 // pred_region
      %s29 = ssub.s32 2048, 2048
      %30 = vsyncadd [#allocation6], %s29
      %s31 = sshll.u32 [#allocation5], 4
      %s32 = int_to_ptr.vmem [resolvable:$true] %s31
      %37 = dma.hbm_to_vmem [thread:$0]  %s1, 2048, %s32, [#allocation6], 128, 128, 8
    $region9: #{tpu_custom_call.1} parent=1 // pred_fallthru
      _
    // Predicated region
    $region10: #{tpu_custom_call.1} parent=1 // pred_check
      _
    $region11: #{tpu_custom_call.1} parent=1 // pred_check_branch
      %39 = sbr.rel (0) target = $region13
    $region12: #{tpu_custom_call.1} parent=1 // pred_region
      _
    $region13: #{tpu_custom_call.1} parent=1 // pred_fallthru
      _
    // Predicated region
    $region14: #{tpu_custom_call.1} parent=1 // pred_check
      _
    $region15: #{tpu_custom_call.1} parent=1 // pred_check_branch
      %41 = sbr.rel (0) target = $region17
    $region16: #{tpu_custom_call.1} parent=1 // pred_region
      %s43 = ssub.s32 2048, 2048
      %44 = vsyncadd [#allocation6], %s43
      %s45 = sshll.u32 [#allocation7], 4
      %s46 = int_to_ptr.vmem [resolvable:$true] %s45
      %51 = dma.hbm_to_vmem [thread:$0]  %s3, 2048, %s46, [#allocation6], 128, 128, 8
    $region17: #{tpu_custom_call.1} parent=1 // pred_fallthru
      _
    // Predicated region
    $region18: #{tpu_custom_call.1} parent=1 // pred_check
      _
    $region19: #{tpu_custom_call.1} parent=1 // pred_check_branch
      %53 = sbr.rel (0) target = $region21
    $region20: #{tpu_custom_call.1} parent=1 // pred_region
      _
    $region21: #{tpu_custom_call.1} parent=1 // pred_fallthru
      _
    // Predicated region
    $region22: #{tpu_custom_call.1} parent=1 // pred_check
      _
    $region23: #{tpu_custom_call.1} parent=1 // pred_check_branch
      %55 = sbr.rel (0) target = $region25
    $region24: #{tpu_custom_call.1} parent=1 // pred_region
      %56 = dma.done [#allocation3], 128
    $region25: #{tpu_custom_call.1} parent=1 // pred_fallthru
      _
    // Predicated region
    $region26: #{tpu_custom_call.1} parent=1 // pred_check
      _
    $region27: #{tpu_custom_call.1} parent=1 // pred_check_branch
      %58 = sbr.rel (0) target = $region29
    $region28: #{tpu_custom_call.1} parent=1 // pred_region
      %59 = dma.done [#allocation6], 2048
    $region29: #{tpu_custom_call.1} parent=1 // pred_fallthru
      _
    // Predicated region
    $region30: #{tpu_custom_call.1} parent=1 // pred_check
      _
    $region31: #{tpu_custom_call.1} parent=1 // pred_check_branch
      %61 = sbr.rel (0) target = $region33
    $region32: #{tpu_custom_call.1} parent=1 // pred_region
      %62 = dma.done [#allocation6], 2048
    $region33: #{tpu_custom_call.1} parent=1 // pred_fallthru
      _
    %v63 = vld [vmem:[#allocation2] sm:$0xff]
    %v64 = vld [vmem:[#allocation5] sm:$0xff]
    %v65 = vld [vmem:[#allocation5 + $0x8] sm:$0xff]
    %v66 = vld [vmem:[#allocation5 + $0x10] sm:$0xff]
    %v67 = vld [vmem:[#allocation5 + $0x18] sm:$0xff]
    %v68 = vld [vmem:[#allocation5 + $0x20] sm:$0xff]
    %v69 = vld [vmem:[#allocation5 + $0x28] sm:$0xff]
    %v70 = vld [vmem:[#allocation5 + $0x30] sm:$0xff]
    %v71 = vld [vmem:[#allocation5 + $0x38] sm:$0xff]
    %v72 = vld [vmem:[#allocation5 + $0x40] sm:$0xff]
    %v73 = vld [vmem:[#allocation5 + $0x48] sm:$0xff]
    %v74 = vld [vmem:[#allocation5 + $0x50] sm:$0xff]
    %v75 = vld [vmem:[#allocation5 + $0x58] sm:$0xff]
    %v76 = vld [vmem:[#allocation5 + $0x60] sm:$0xff]
    %v77 = vld [vmem:[#allocation5 + $0x68] sm:$0xff]
    %v78 = vld [vmem:[#allocation5 + $0x70] sm:$0xff]
    %v79 = vld [vmem:[#allocation5 + $0x78] sm:$0xff]
    %v80 = vld [vmem:[%s2] sm:$0x1]
    %v82 = vlaneseq
    %v83 = vshrl.u32 %v82, 7
    %v84 = vsub.s32 0, %v83
    %v85 = vrot.slane %v80, %v84
    %87 = vmatprep.subr.mxu0 0.0
    %88 = vmatpush1.msra.mxu0 %v64
    %89 = vmatprep.subr.mxu0 0.0
    %90 = vmatpush1.msra.mxu0 %v65
    %91 = vmatprep.subr.mxu0 0.0
    %92 = vmatpush1.msra.mxu0 %v66
    %93 = vmatprep.subr.mxu0 0.0
    %94 = vmatpush1.msra.mxu0 %v67
    %95 = vmatprep.subr.mxu0 0.0
    %96 = vmatpush1.msra.mxu0 %v68
    %97 = vmatprep.subr.mxu0 0.0
    %98 = vmatpush1.msra.mxu0 %v69
    %99 = vmatprep.subr.mxu0 0.0
    %100 = vmatpush1.msra.mxu0 %v70
    %101 = vmatprep.subr.mxu0 0.0
    %102 = vmatpush1.msra.mxu0 %v71
    %103 = vmatprep.subr.mxu0 0.0
    %104 = vmatpush1.msra.mxu0 %v72
    %105 = vmatprep.subr.mxu0 0.0
    %106 = vmatpush1.msra.mxu0 %v73
    %107 = vmatprep.subr.mxu0 0.0
    %108 = vmatpush1.msra.mxu0 %v74
    %109 = vmatprep.subr.mxu0 0.0
    %110 = vmatpush1.msra.mxu0 %v75
    %111 = vmatprep.subr.mxu0 0.0
    %112 = vmatpush1.msra.mxu0 %v76
    %113 = vmatprep.subr.mxu0 0.0
    %114 = vmatpush1.msra.mxu0 %v77
    %115 = vmatprep.subr.mxu0 0.0
    %116 = vmatpush1.msra.mxu0 %v78
    %117 = vmatprep.subr.mxu0 0.0
    %118 = vmatpush1.msra.mxu0 %v79
    %119 = vmatprep.subr.mxu0 0.0
    %120 = vmatpush1.msra.mxu0 0.0
    %121 = vmatprep.subr.mxu0 0.0
    %122 = vmatpush1.msra.mxu0 0.0
    %123 = vmatprep.subr.mxu0 0.0
    %124 = vmatpush1.msra.mxu0 0.0
    %125 = vmatprep.subr.mxu0 0.0
    %126 = vmatpush1.msra.mxu0 0.0
    %127 = vmatprep.subr.mxu0 0.0
    %128 = vmatpush1.msra.mxu0 0.0
    %129 = vmatprep.subr.mxu0 0.0
    %130 = vmatpush1.msra.mxu0 0.0
    %131 = vmatprep.subr.mxu0 0.0
    %132 = vmatpush1.msra.mxu0 0.0
    %133 = vmatprep.subr.mxu0 0.0
    %134 = vmatpush1.msra.mxu0 0.0
    %135 = vmatprep.subr.mxu0 0.0
    %136 = vmatpush1.msra.mxu0 0.0
    %137 = vmatprep.subr.mxu0 0.0
    %138 = vmatpush1.msra.mxu0 0.0
    %139 = vmatprep.subr.mxu0 0.0
    %140 = vmatpush1.msra.mxu0 0.0
    %141 = vmatprep.subr.mxu0 0.0
    %142 = vmatpush1.msra.mxu0 0.0
    %143 = vmatprep.subr.mxu0 0.0
    %144 = vmatpush1.msra.mxu0 0.0
    %145 = vmatprep.subr.mxu0 0.0
    %146 = vmatpush1.msra.mxu0 0.0
    %147 = vmatprep.subr.mxu0 0.0
    %148 = vmatpush1.msra.mxu0 0.0
    %149 = vmatprep.subr.mxu0 0.0
    %150 = vmatpush1.msra.mxu0 0.0
    %151 = vmatprep.mubr.f32.mxu0 0.0
    %152 = vmatmul.mubr.f32.gmra.mrb[0].mxu0 %v63
    %v153 = vpop.f32.mrb[0].mxu0
    %v154 = vadd.f32 %v85, %v153
    %v155 = vpop.f32.mrb[0].mxu0
    %156 = vdwg.mxu0
    %157 = vst [vmem:[#allocation8] sm:$0xff] %v154
    %v158 = vld [vmem:[#allocation7] sm:$0xff]
    %v159 = vld [vmem:[#allocation7 + $0x8] sm:$0xff]
    %v160 = vld [vmem:[#allocation7 + $0x10] sm:$0xff]
    %v161 = vld [vmem:[#allocation7 + $0x18] sm:$0xff]
    %v162 = vld [vmem:[#allocation7 + $0x20] sm:$0xff]
    %v163 = vld [vmem:[#allocation7 + $0x28] sm:$0xff]
    %v164 = vld [vmem:[#allocation7 + $0x30] sm:$0xff]
    %v165 = vld [vmem:[#allocation7 + $0x38] sm:$0xff]
    %v166 = vld [vmem:[#allocation7 + $0x40] sm:$0xff]
    %v167 = vld [vmem:[#allocation7 + $0x48] sm:$0xff]
    %v168 = vld [vmem:[#allocation7 + $0x50] sm:$0xff]
    %v169 = vld [vmem:[#allocation7 + $0x58] sm:$0xff]
    %v170 = vld [vmem:[#allocation7 + $0x60] sm:$0xff]
    %v171 = vld [vmem:[#allocation7 + $0x68] sm:$0xff]
    %v172 = vld [vmem:[#allocation7 + $0x70] sm:$0xff]
    %v173 = vld [vmem:[#allocation7 + $0x78] sm:$0xff]
    %v174 = vld [vmem:[%s4] sm:$0x1]
    %v176 = vlaneseq
    %v177 = vshrl.u32 %v176, 7
    %v178 = vsub.s32 0, %v177
    %v179 = vrot.slane %v174, %v178
    %181 = vmatprep.subr.mxu0 0.0
    %182 = vmatpush1.msra.mxu0 %v158
    %183 = vmatprep.subr.mxu0 0.0
    %184 = vmatpush1.msra.mxu0 %v159
    %185 = vmatprep.subr.mxu0 0.0
    %186 = vmatpush1.msra.mxu0 %v160
    %187 = vmatprep.subr.mxu0 0.0
    %188 = vmatpush1.msra.mxu0 %v161
    %189 = vmatprep.subr.mxu0 0.0
    %190 = vmatpush1.msra.mxu0 %v162
    %191 = vmatprep.subr.mxu0 0.0
    %192 = vmatpush1.msra.mxu0 %v163
    %193 = vmatprep.subr.mxu0 0.0
    %194 = vmatpush1.msra.mxu0 %v164
    %195 = vmatprep.subr.mxu0 0.0
    %196 = vmatpush1.msra.mxu0 %v165
    %197 = vmatprep.subr.mxu0 0.0
    %198 = vmatpush1.msra.mxu0 %v166
    %199 = vmatprep.subr.mxu0 0.0
    %200 = vmatpush1.msra.mxu0 %v167
    %201 = vmatprep.subr.mxu0 0.0
    %202 = vmatpush1.msra.mxu0 %v168
    %203 = vmatprep.subr.mxu0 0.0
    %204 = vmatpush1.msra.mxu0 %v169
    %205 = vmatprep.subr.mxu0 0.0
    %206 = vmatpush1.msra.mxu0 %v170
    %207 = vmatprep.subr.mxu0 0.0
    %208 = vmatpush1.msra.mxu0 %v171
    %209 = vmatprep.subr.mxu0 0.0
    %210 = vmatpush1.msra.mxu0 %v172
    %211 = vmatprep.subr.mxu0 0.0
    %212 = vmatpush1.msra.mxu0 %v173
    %213 = vmatprep.subr.mxu0 0.0
    %214 = vmatpush1.msra.mxu0 0.0
    %215 = vmatprep.subr.mxu0 0.0
    %216 = vmatpush1.msra.mxu0 0.0
    %217 = vmatprep.subr.mxu0 0.0
    %218 = vmatpush1.msra.mxu0 0.0
    %219 = vmatprep.subr.mxu0 0.0
    %220 = vmatpush1.msra.mxu0 0.0
    %221 = vmatprep.subr.mxu0 0.0
    %222 = vmatpush1.msra.mxu0 0.0
    %223 = vmatprep.subr.mxu0 0.0
    %224 = vmatpush1.msra.mxu0 0.0
    %225 = vmatprep.subr.mxu0 0.0
    %226 = vmatpush1.msra.mxu0 0.0
    %227 = vmatprep.subr.mxu0 0.0
    %228 = vmatpush1.msra.mxu0 0.0
    %229 = vmatprep.subr.mxu0 0.0
    %230 = vmatpush1.msra.mxu0 0.0
    %231 = vmatprep.subr.mxu0 0.0
    %232 = vmatpush1.msra.mxu0 0.0
    %233 = vmatprep.subr.mxu0 0.0
    %234 = vmatpush1.msra.mxu0 0.0
    %235 = vmatprep.subr.mxu0 0.0
    %236 = vmatpush1.msra.mxu0 0.0
    %237 = vmatprep.subr.mxu0 0.0
    %238 = vmatpush1.msra.mxu0 0.0
    %239 = vmatprep.subr.mxu0 0.0
    %240 = vmatpush1.msra.mxu0 0.0
    %241 = vmatprep.subr.mxu0 0.0
    %242 = vmatpush1.msra.mxu0 0.0
    %243 = vmatprep.subr.mxu0 0.0
    %244 = vmatpush1.msra.mxu0 0.0
    %245 = vmatprep.mubr.f32.mxu0 0.0
    %246 = vmatmul.mubr.f32.gmra.mrb[0].mxu0 %v154
    %v247 = vpop.f32.mrb[0].mxu0
    %v248 = vadd.f32 %v179, %v247
    %v249 = vpop.f32.mrb[0].mxu0
    %250 = vdwg.mxu0
    %251 = vst [vmem:[#allocation9] sm:$0xff] %v248
    // Predicated region
    $region34: #{tpu_custom_call.1} parent=1 // pred_check
      _
    $region35: #{tpu_custom_call.1} parent=1 // pred_check_branch
      %253 = sbr.rel (0) target = $region37
    $region36: #{tpu_custom_call.1} parent=1 // pred_region
      %s255 = ssub.s32 128, 128
      %256 = vsyncadd [#allocation4], %s255
      %s258 = sshll.u32 [#allocation8], 4
      %s259 = int_to_ptr.vmem [resolvable:$true] %s258
      %261 = dma.vmem_to_hbm [thread:$0]  %s259, 128, %s5, [#allocation4]
    $region37: #{tpu_custom_call.1} parent=1 // pred_fallthru
      _
    // Predicated region
    $region38: #{tpu_custom_call.1} parent=1 // pred_check
      _
    $region39: #{tpu_custom_call.1} parent=1 // pred_check_branch
      %263 = sbr.rel (0) target = $region41
    $region40: #{tpu_custom_call.1} parent=1 // pred_region
      %s265 = ssub.s32 128, 128
      %266 = vsyncadd [#allocation10], %s265
      %s268 = sshll.u32 [#allocation9], 4
      %s269 = int_to_ptr.vmem [resolvable:$true] %s268
      %271 = dma.vmem_to_hbm [thread:$0]  %s269, 128, %s6, [#allocation10]
    $region41: #{tpu_custom_call.1} parent=1 // pred_fallthru
      _
    // Predicated region
    $region42: #{tpu_custom_call.1} parent=1 // pred_check
      _
    $region43: #{tpu_custom_call.1} parent=1 // pred_check_branch
      %273 = sbr.rel (0) target = $region45
    $region44: #{tpu_custom_call.1} parent=1 // pred_region
      %274 = dma.done [#allocation4], 128
    $region45: #{tpu_custom_call.1} parent=1 // pred_fallthru
      _
    // Predicated region
    $region46: #{tpu_custom_call.1} parent=1 // pred_check
      _
    $region47: #{tpu_custom_call.1} parent=1 // pred_check_branch
      %276 = sbr.rel (0) target = $region49
    $region48: #{tpu_custom_call.1} parent=1 // pred_region
      %277 = dma.done [#allocation10], 128
    $region49: #{tpu_custom_call.1} parent=1 // pred_fallthru
      _
    %278 = vsyncpa [#allocation3], 1
    %279 = vsyncpa [#allocation6], 1
    %280 = vsyncpa [#allocation4], 1
    %281 = vsyncpa [#allocation10], 1

</llo_original>
